<compile_context>
chip_gen: v7x
topology: tpu7x:2x2x1
jax: 0.10.0
libtpu: 0.0.40
codegen_flags: <defaults>
</compile_context>

<pallas_src>
import functools

import numpy as np
import jax
import jax.numpy as jnp
from jax.experimental import pallas as pl
from jax.experimental.pallas import tpu as pltpu

# gray_coeffs / 256, same as the PyTorch module
_GRAY = (65.738 / 256.0, 129.057 / 256.0, 25.064 / 256.0)


def _to_gray(a):
    """a: (C, R, W) array -> (R, W) gray image (f32 math done by caller)."""
    if a.shape[0] == 3:
        return a[0] * _GRAY[0] + a[1] * _GRAY[1] + a[2] * _GRAY[2]
    return a[0]


def _grad_core(gc, halo_up, halo_dn, g_row0, H):
    """Sobel-style gradient magnitude for one (TH, W) gray tile.

    gc:      (TH, W) f32 gray tile (global rows [g_row0, g_row0+TH))
    halo_up: (1, W) f32 gray of global row g_row0-1 (content irrelevant if
             g_row0 == 0, it gets masked)
    halo_dn: (1, W) f32 gray of global row g_row0+TH (masked if last row)
    """
    TH, W = gc.shape
    # vertical neighbours (sublane shifts + halo rows)
    up = jnp.concatenate([halo_up, gc[:-1, :]], axis=0)      # row r -> gray(g-1)
    dn = jnp.concatenate([gc[1:, :], halo_dn], axis=0)       # row r -> gray(g+1)
    grow = jax.lax.broadcasted_iota(jnp.int32, (TH, W), 0) + g_row0
    up = jnp.where(grow == 0, 0.0, up)                       # zero-pad above image
    dn = jnp.where(grow == H - 1, 0.0, dn)                   # zero-pad below image
    x_v = dn - up
    # horizontal neighbours (lane shifts with explicit zero columns)
    zc = jnp.zeros((TH, 1), gc.dtype)
    left = jnp.concatenate([zc, gc[:, :-1]], axis=1)          # col j -> gray(j-1)
    right = jnp.concatenate([gc[:, 1:], zc], axis=1)          # col j -> gray(j+1)
    x_h = right - left
    return jnp.sqrt(x_v * x_v + x_h * x_h + 1e-6)


def _grad_kernel_tiled(H, TH, xc_ref, xu_ref, xd_ref, o_ref):
    """xc_ref: (C, TH, W) center tile; xu_ref/xd_ref: (C, 8, W) halo row blocks."""
    t = pl.program_id(1)
    gc = _to_gray(xc_ref[...]).astype(jnp.float32)
    hu = _to_gray(xu_ref[:, 7:8, :]).astype(jnp.float32)   # last row of block above
    hd = _to_gray(xd_ref[:, 0:1, :]).astype(jnp.float32)   # first row of block below
    out = _grad_core(gc, hu, hd, t * TH, H)
    o_ref[...] = out.astype(o_ref.dtype)


def _grad_kernel_whole(H, xc_ref, o_ref):
    """Fallback: one whole image per grid step (used only when H % 8 != 0)."""
    gc = _to_gray(xc_ref[...]).astype(jnp.float32)
    z = jnp.zeros((1, gc.shape[1]), jnp.float32)
    o_ref[...] = _grad_core(gc, z, z, 0, H).astype(o_ref.dtype)


def _choose_tile_h(H, W, C, itemsize, target_rows):
    """Largest multiple-of-8 divisor of H that is <= target_rows and keeps the
    (C, TH, W) input tile around <= 8 MiB.  Assumes H % 8 == 0."""
    budget_rows = max(8, (8 << 20) // max(1, C * W * itemsize))
    cap = min(H, target_rows, budget_rows)
    cap -= cap % 8
    cap = max(cap, 8)
    if cap >= H:
        return H
    for th in range(cap, 7, -8):
        if H % th == 0:
            return th
    return H


def grad_layer(x, tile_h_target=512):
    """Pallas implementation of GradLayer.forward. x: (N, C, H, W), C in {1, 3}."""
    B, C, H, W = x.shape
    if C not in (1, 3):
        raise ValueError("GradLayer expects 1 or 3 input channels, got %d" % C)
    dsz = x.dtype.itemsize
    out_shape = jax.ShapeDtypeStruct((B, 1, H, W), x.dtype)
    cost = pl.CostEstimate(
        flops=int(B * H * W * (11 if C == 3 else 6)),
        transcendentals=int(B * H * W),
        bytes_accessed=int(B * H * W * dsz * (C + 1)),
    )

    if H % 8 == 0:
        # --- tiled path: grid over (batch, H tiles), halo via clamped 8-row views
        TH = _choose_tile_h(H, W, C, dsz, tile_h_target)
        nt = H // TH
        TH8, nh8 = TH // 8, H // 8
        kernel = functools.partial(_grad_kernel_tiled, H, TH)
        grid = (B, nt)
        in_specs = [
            # center tile (no overlap)
            pl.BlockSpec((pl.Squeezed(), C, TH, W), lambda b, t: (b, 0, t, 0)),
            # 8-row block just above the tile (clamped at the top edge; masked)
            pl.BlockSpec((pl.Squeezed(), C, 8, W),
                         lambda b, t: (b, 0, jnp.maximum(t * TH8 - 1, 0), 0)),
            # 8-row block just below the tile (clamped at the bottom edge; masked)
            pl.BlockSpec((pl.Squeezed(), C, 8, W),
                         lambda b, t: (b, 0, jnp.minimum((t + 1) * TH8, nh8 - 1), 0)),
        ]
        out_specs = pl.BlockSpec((pl.Squeezed(), pl.Squeezed(), TH, W),
                                 lambda b, t: (b, 0, t, 0))
        operands = (x, x, x)
        dim_sem = ("parallel", "parallel")
        in_tile = C * TH * W * dsz + 2 * C * 8 * W * dsz
        out_tile = TH * W * dsz
        temps = 6 * TH * W * 4
        vmem_bytes = 2 * (in_tile + out_tile) + temps + (4 << 20)
    else:
        # --- fallback: whole image per batch element (rare: H not multiple of 8)
        # TODO(synk): add a ragged-H tiled path (manual DMA halo) if ever needed.
        TH = H
        kernel = functools.partial(_grad_kernel_whole, H)
        grid = (B,)
        in_specs = [pl.BlockSpec((pl.Squeezed(), C, H, W), lambda b: (b, 0, 0, 0))]
        out_specs = pl.BlockSpec((pl.Squeezed(), pl.Squeezed(), H, W),
                                 lambda b: (b, 0, 0, 0))
        operands = (x,)
        dim_sem = ("parallel",)
        vmem_bytes = 2 * (C + 1) * H * W * dsz + 6 * H * W * 4 + (4 << 20)

    vmem_bytes = int(min(64 << 20, max(16 << 20, vmem_bytes)))
    return pl.pallas_call(
        kernel,
        out_shape=out_shape,
        grid=grid,
        in_specs=in_specs,
        out_specs=out_specs,
        compiler_params=pltpu.CompilerParams(
            dimension_semantics=dim_sem,
            vmem_limit_bytes=vmem_bytes,
        ),
        cost_estimate=cost,
    )(*operands)


def _ref_grad(x):
    """Pure-JAX reference mirroring the PyTorch forward exactly."""
    if x.shape[1] == 3:
        c = jnp.asarray(_GRAY, dtype=jnp.float32)
        x = jnp.sum(x.astype(jnp.float32) * c[None, :, None, None],
                    axis=1, keepdims=True)
    else:
        x = x.astype(jnp.float32)
    xp = jnp.pad(x, ((0, 0), (0, 0), (1, 1), (1, 1)))
    x_v = xp[:, :, 2:, 1:-1] - xp[:, :, :-2, 1:-1]
    x_h = xp[:, :, 1:-1, 2:] - xp[:, :, 1:-1, :-2]
    return jnp.sqrt(x_v * x_v + x_h * x_h + 1e-6)


if __name__ == "__main__":
    key = jax.random.PRNGKey(0)
    k1, k2, k3 = jax.random.split(key, 3)

    # RGB input, single H tile
    x1 = jax.random.uniform(k1, (2, 3, 16, 16), dtype=jnp.float32)
    y1 = grad_layer(x1)
    jax.block_until_ready(y1)
    np.testing.assert_allclose(np.asarray(y1), np.asarray(_ref_grad(x1)),
                               rtol=1e-5, atol=1e-5)
    assert y1.shape == (2, 1, 16, 16)

    # already-gray input (C == 1 path)
    x2 = jax.random.uniform(k2, (2, 1, 16, 16), dtype=jnp.float32)
    y2 = grad_layer(x2)
    jax.block_until_ready(y2)
    np.testing.assert_allclose(np.asarray(y2), np.asarray(_ref_grad(x2)),
                               rtol=1e-5, atol=1e-5)

    # multi-tile path (forces TH=16 -> 2 H tiles, exercises halo rows)
    x3 = jax.random.uniform(k3, (1, 3, 32, 128), dtype=jnp.float32)
    y3 = grad_layer(x3, tile_h_target=16)
    jax.block_until_ready(y3)
    np.testing.assert_allclose(np.asarray(y3), np.asarray(_ref_grad(x3)),
                               rtol=1e-5, atol=1e-5)

    print("KERNEL_OK")
</pallas_src>

<mosaic_0001>
module attributes {stable_mosaic.version = 11 : i64} {
  func.func @_grad_kernel_tiled(%arg0: i32, %arg1: i32, %arg2: memref<1x3x16x16xf32, #tpu.memory_space<vmem>>, %arg3: memref<1x3x8x16xf32, #tpu.memory_space<vmem>>, %arg4: memref<1x3x8x16xf32, #tpu.memory_space<vmem>>, %arg5: memref<1x1x16x16xf32, #tpu.memory_space<vmem>>) attributes {dimension_semantics = [#tpu.dimension_semantics<parallel>, #tpu.dimension_semantics<parallel>], iteration_bounds = array<i64: 2, 1>, scalar_prefetch = 0 : i64, scratch_operands = 0 : i64, tpu.core_type = #tpu.core_type<tc>, window_params = [{transform_indices = @transform_0, window_bounds = array<i64: 1, 3, 16, 16>}, {transform_indices = @transform_1, window_bounds = array<i64: 1, 3, 8, 16>}, {transform_indices = @transform_2, window_bounds = array<i64: 1, 3, 8, 16>}, {transform_indices = @transform_3, window_bounds = array<i64: 1, 1, 16, 16>}]} {
    %c0 = arith.constant 0 : index
    %c0_0 = arith.constant 0 : index
    %c0_1 = arith.constant 0 : index
    %c0_2 = arith.constant 0 : index
    %0 = vector.load %arg2[%c0, %c0_0, %c0_1, %c0_2] : memref<1x3x16x16xf32, #tpu.memory_space<vmem>>, vector<1x3x16x16xf32>
    %1 = vector.shape_cast %0 : vector<1x3x16x16xf32> to vector<3x16x16xf32>
    %2 = vector.extract_strided_slice %1 {offsets = [0, 0, 0], sizes = [1, 16, 16], strides = [1, 1, 1]} : vector<3x16x16xf32> to vector<1x16x16xf32>
    %3 = vector.shape_cast %2 : vector<1x16x16xf32> to vector<16x16xf32>
    %cst = arith.constant 0.256789058 : f32
    %4 = vector.broadcast %cst : f32 to vector<16x16xf32>
    %5 = arith.mulf %3, %4 : vector<16x16xf32>
    %6 = vector.extract_strided_slice %1 {offsets = [1, 0, 0], sizes = [1, 16, 16], strides = [1, 1, 1]} : vector<3x16x16xf32> to vector<1x16x16xf32>
    %7 = vector.shape_cast %6 : vector<1x16x16xf32> to vector<16x16xf32>
    %cst_3 = arith.constant 0.504128933 : f32
    %8 = vector.broadcast %cst_3 : f32 to vector<16x16xf32>
    %9 = arith.mulf %7, %8 : vector<16x16xf32>
    %10 = arith.addf %5, %9 : vector<16x16xf32>
    %11 = vector.extract_strided_slice %1 {offsets = [2, 0, 0], sizes = [1, 16, 16], strides = [1, 1, 1]} : vector<3x16x16xf32> to vector<1x16x16xf32>
    %12 = vector.shape_cast %11 : vector<1x16x16xf32> to vector<16x16xf32>
    %cst_4 = arith.constant 0.0979062467 : f32
    %13 = vector.broadcast %cst_4 : f32 to vector<16x16xf32>
    %14 = arith.mulf %12, %13 : vector<16x16xf32>
    %15 = arith.addf %10, %14 : vector<16x16xf32>
    %c0_5 = arith.constant 0 : index
    %c0_6 = arith.constant 0 : index
    %c7 = arith.constant 7 : index
    %c0_7 = arith.constant 0 : index
    %16 = vector.load %arg3[%c0_5, %c0_6, %c7, %c0_7] : memref<1x3x8x16xf32, #tpu.memory_space<vmem>>, vector<1x3x1x16xf32>
    %17 = vector.shape_cast %16 : vector<1x3x1x16xf32> to vector<3x1x16xf32>
    %18 = vector.extract_strided_slice %17 {offsets = [0, 0, 0], sizes = [1, 1, 16], strides = [1, 1, 1]} : vector<3x1x16xf32> to vector<1x1x16xf32>
    %19 = vector.shape_cast %18 : vector<1x1x16xf32> to vector<1x16xf32>
    %cst_8 = arith.constant 0.256789058 : f32
    %20 = vector.broadcast %cst_8 : f32 to vector<1x16xf32>
    %21 = arith.mulf %19, %20 : vector<1x16xf32>
    %22 = vector.extract_strided_slice %17 {offsets = [1, 0, 0], sizes = [1, 1, 16], strides = [1, 1, 1]} : vector<3x1x16xf32> to vector<1x1x16xf32>
    %23 = vector.shape_cast %22 : vector<1x1x16xf32> to vector<1x16xf32>
    %cst_9 = arith.constant 0.504128933 : f32
    %24 = vector.broadcast %cst_9 : f32 to vector<1x16xf32>
    %25 = arith.mulf %23, %24 : vector<1x16xf32>
    %26 = arith.addf %21, %25 : vector<1x16xf32>
    %27 = vector.extract_strided_slice %17 {offsets = [2, 0, 0], sizes = [1, 1, 16], strides = [1, 1, 1]} : vector<3x1x16xf32> to vector<1x1x16xf32>
    %28 = vector.shape_cast %27 : vector<1x1x16xf32> to vector<1x16xf32>
    %cst_10 = arith.constant 0.0979062467 : f32
    %29 = vector.broadcast %cst_10 : f32 to vector<1x16xf32>
    %30 = arith.mulf %28, %29 : vector<1x16xf32>
    %31 = arith.addf %26, %30 : vector<1x16xf32>
    %c0_11 = arith.constant 0 : index
    %c0_12 = arith.constant 0 : index
    %c0_13 = arith.constant 0 : index
    %c0_14 = arith.constant 0 : index
    %32 = vector.load %arg4[%c0_11, %c0_12, %c0_13, %c0_14] : memref<1x3x8x16xf32, #tpu.memory_space<vmem>>, vector<1x3x1x16xf32>
    %33 = vector.shape_cast %32 : vector<1x3x1x16xf32> to vector<3x1x16xf32>
    %34 = vector.extract_strided_slice %33 {offsets = [0, 0, 0], sizes = [1, 1, 16], strides = [1, 1, 1]} : vector<3x1x16xf32> to vector<1x1x16xf32>
    %35 = vector.shape_cast %34 : vector<1x1x16xf32> to vector<1x16xf32>
    %cst_15 = arith.constant 0.256789058 : f32
    %36 = vector.broadcast %cst_15 : f32 to vector<1x16xf32>
    %37 = arith.mulf %35, %36 : vector<1x16xf32>
    %38 = vector.extract_strided_slice %33 {offsets = [1, 0, 0], sizes = [1, 1, 16], strides = [1, 1, 1]} : vector<3x1x16xf32> to vector<1x1x16xf32>
    %39 = vector.shape_cast %38 : vector<1x1x16xf32> to vector<1x16xf32>
    %cst_16 = arith.constant 0.504128933 : f32
    %40 = vector.broadcast %cst_16 : f32 to vector<1x16xf32>
    %41 = arith.mulf %39, %40 : vector<1x16xf32>
    %42 = arith.addf %37, %41 : vector<1x16xf32>
    %43 = vector.extract_strided_slice %33 {offsets = [2, 0, 0], sizes = [1, 1, 16], strides = [1, 1, 1]} : vector<3x1x16xf32> to vector<1x1x16xf32>
    %44 = vector.shape_cast %43 : vector<1x1x16xf32> to vector<1x16xf32>
    %cst_17 = arith.constant 0.0979062467 : f32
    %45 = vector.broadcast %cst_17 : f32 to vector<1x16xf32>
    %46 = arith.mulf %44, %45 : vector<1x16xf32>
    %47 = arith.addf %42, %46 : vector<1x16xf32>
    %c16_i32 = arith.constant 16 : i32
    %48 = arith.muli %arg1, %c16_i32 : i32
    %49 = vector.extract_strided_slice %15 {offsets = [0, 0], sizes = [15, 16], strides = [1, 1]} : vector<16x16xf32> to vector<15x16xf32>
    %50 = tpu.concatenate %31, %49 in 0 : vector<1x16xf32>, vector<15x16xf32> -> vector<16x16xf32>
    %51 = vector.extract_strided_slice %15 {offsets = [1, 0], sizes = [15, 16], strides = [1, 1]} : vector<16x16xf32> to vector<15x16xf32>
    %52 = tpu.concatenate %51, %47 in 0 : vector<15x16xf32>, vector<1x16xf32> -> vector<16x16xf32>
    %53 = tpu.iota {dimensions = array<i32: 0>} : vector<16x16xi32>
    %54 = vector.broadcast %48 : i32 to vector<16x16xi32>
    %55 = arith.addi %53, %54 : vector<16x16xi32>
    %c0_i32 = arith.constant 0 : i32
    %56 = vector.broadcast %c0_i32 : i32 to vector<16x16xi32>
    %57 = arith.cmpi eq, %55, %56 : vector<16x16xi32>
    %cst_18 = arith.constant 0.000000e+00 : f32
    %58 = vector.broadcast %cst_18 : f32 to vector<16x16xf32>
    %59 = arith.select %57, %58, %50 : vector<16x16xi1>, vector<16x16xf32>
    %c15_i32 = arith.constant 15 : i32
    %60 = vector.broadcast %c15_i32 : i32 to vector<16x16xi32>
    %61 = arith.cmpi eq, %55, %60 : vector<16x16xi32>
    %cst_19 = arith.constant 0.000000e+00 : f32
    %62 = vector.broadcast %cst_19 : f32 to vector<16x16xf32>
    %63 = arith.select %61, %62, %52 : vector<16x16xi1>, vector<16x16xf32>
    %64 = arith.subf %63, %59 : vector<16x16xf32>
    %cst_20 = arith.constant 0.000000e+00 : f32
    %65 = vector.broadcast %cst_20 : f32 to vector<16x1xf32>
    %66 = vector.extract_strided_slice %15 {offsets = [0, 0], sizes = [16, 15], strides = [1, 1]} : vector<16x16xf32> to vector<16x15xf32>
    %67 = tpu.concatenate %65, %66 in 1 : vector<16x1xf32>, vector<16x15xf32> -> vector<16x16xf32>
    %68 = vector.extract_strided_slice %15 {offsets = [0, 1], sizes = [16, 15], strides = [1, 1]} : vector<16x16xf32> to vector<16x15xf32>
    %69 = tpu.concatenate %68, %65 in 1 : vector<16x15xf32>, vector<16x1xf32> -> vector<16x16xf32>
    %70 = arith.subf %69, %67 : vector<16x16xf32>
    %71 = arith.mulf %64, %64 : vector<16x16xf32>
    %72 = arith.mulf %70, %70 : vector<16x16xf32>
    %73 = arith.addf %71, %72 : vector<16x16xf32>
    %cst_21 = arith.constant 9.99999997E-7 : f32
    %74 = vector.broadcast %cst_21 : f32 to vector<16x16xf32>
    %75 = arith.addf %73, %74 : vector<16x16xf32>
    %76 = math.sqrt %75 : vector<16x16xf32>
    %c0_22 = arith.constant 0 : index
    %c0_23 = arith.constant 0 : index
    %c0_24 = arith.constant 0 : index
    %c0_25 = arith.constant 0 : index
    %77 = vector.load %arg5[%c0_22, %c0_23, %c0_24, %c0_25] : memref<1x1x16x16xf32, #tpu.memory_space<vmem>>, vector<1x1x16x16xf32>
    %78 = vector.shape_cast %77 : vector<1x1x16x16xf32> to vector<16x16xf32>
    %79 = vector.shape_cast %76 : vector<16x16xf32> to vector<1x1x16x16xf32>
    tpu.vector_store %arg5[%c0_22, %c0_23, %c0_24, %c0_25], %79 {strides = array<i32>} : memref<1x1x16x16xf32, #tpu.memory_space<vmem>>, vector<1x1x16x16xf32>,
    return
  }
  func.func @transform_0(%arg0: i32, %arg1: i32) -> (i32, i32, i32, i32) {
    %c0_i32 = arith.constant 0 : i32
    %c0_i32_0 = arith.constant 0 : i32
    %c0_i32_1 = arith.constant 0 : i32
    return %arg0, %c0_i32, %arg1, %c0_i32_0 : i32, i32, i32, i32
  }
  func.func @transform_1(%arg0: i32, %arg1: i32) -> (i32, i32, i32, i32) {
    %c2_i32 = arith.constant 2 : i32
    %0 = arith.muli %arg1, %c2_i32 : i32
    %c1_i32 = arith.constant 1 : i32
    %1 = arith.subi %0, %c1_i32 : i32
    %c0_i32 = arith.constant 0 : i32
    %2 = arith.maxsi %1, %c0_i32 : i32
    %c0_i32_0 = arith.constant 0 : i32
    %c0_i32_1 = arith.constant 0 : i32
    %c0_i32_2 = arith.constant 0 : i32
    return %arg0, %c0_i32_0, %2, %c0_i32_1 : i32, i32, i32, i32
  }
  func.func @transform_2(%arg0: i32, %arg1: i32) -> (i32, i32, i32, i32) {
    %c1_i32 = arith.constant 1 : i32
    %0 = arith.addi %arg1, %c1_i32 : i32
    %c2_i32 = arith.constant 2 : i32
    %1 = arith.muli %0, %c2_i32 : i32
    %c1_i32_0 = arith.constant 1 : i32
    %2 = arith.minsi %1, %c1_i32_0 : i32
    %c0_i32 = arith.constant 0 : i32
    %c0_i32_1 = arith.constant 0 : i32
    %c0_i32_2 = arith.constant 0 : i32
    return %arg0, %c0_i32, %2, %c0_i32_1 : i32, i32, i32, i32
  }
  func.func @transform_3(%arg0: i32, %arg1: i32) -> (i32, i32, i32, i32) {
    %c0_i32 = arith.constant 0 : i32
    %c0_i32_0 = arith.constant 0 : i32
    %c0_i32_1 = arith.constant 0 : i32
    return %arg0, %c0_i32, %arg1, %c0_i32_0 : i32, i32, i32, i32
  }
}

</mosaic_0001>

<llo_original>
// kernel: tpu_custom_call.1
$region0: #{tpu_custom_call.1}
  #allocation0 [shape = 'u32[]', space=smem, size = 0x4, offset = 0x4, fixed_abs, tag = 'smem constant byte address 0x4 - core index']
  #allocation1 [shape = 'u32[144,128]{1,0:T(1,128)}', space=vmem, size = 0x12000, scoped, tag = 'internal scratch']
  %s0 = inlined_call_operand.hbm [shape: f32[2,3,16,16], index: 0, kind: input, shape index: {}]
  %s1 = inlined_call_operand.hbm [shape: f32[2,3,16,16], index: 1, kind: input, shape index: {}]
  %s2 = inlined_call_operand.hbm [shape: f32[2,3,16,16], index: 2, kind: input, shape index: {}]
  %s3 = inlined_call_operand.hbm [shape: f32[2,1,16,16], index: 3, kind: output, shape index: {}]
  %s4 = sld [smem:[#allocation0]]
  $region57: #{tpu_custom_call.1} parent=0
    _
  %s6 = ssub.s32 1, %s4
  %s7 = scalar_select 0, %s6, %s4
  $region1: #{tpu_custom_call.1} parent=0
    #allocation2 [shape = 'u8[49152]{0}', space=vmem, size = 0xc000, scoped, tag = 'input window, operand 0']
    #allocation3 [shape = 's32[2]{0}', space=sflag, size = 0x8, scoped, tag = 'scoped memory for tpu_custom_call.1']
    #allocation4 [shape = 's32[2]{0}', space=sflag, size = 0x8, scoped, tag = 'scoped memory for tpu_custom_call.1']
    #allocation5 [shape = 'u8[24576]{0}', space=vmem, size = 0x6000, scoped, tag = 'input window, operand 1']
    #allocation6 [shape = 's32[2]{0}', space=sflag, size = 0x8, scoped, tag = 'scoped memory for tpu_custom_call.1']
    #allocation7 [shape = 'u8[24576]{0}', space=vmem, size = 0x6000, scoped, tag = 'input window, operand 2']
    #allocation8 [shape = 'u8[16384]{0}', space=vmem, size = 0x4000, scoped, tag = 'output window, operand 0']
    %8 = vsyncpa [#allocation3], 0
    %s9 = scalar_lea.sflag [#allocation3], 1
    %10 = vsyncpa %s9, 0
    %11 = vsyncpa [#allocation6], 0
    %s12 = scalar_lea.sflag [#allocation6], 1
    %13 = vsyncpa %s12, 0
    %14 = vsyncpa [#allocation4], 0
    %s15 = scalar_lea.sflag [#allocation4], 1
    %16 = vsyncpa %s15, 0
    loop: start=0, step=1, limit=4
    $region2: #{tpu_custom_call.1} parent=1 // loop_pre_header
      _
    $region3: #{tpu_custom_call.1} parent=1 // loop_header
      %s18 = sphi 0, %s22
      %p19 = scmp.ge.s32.totalorder %s18, 4
      %s25 = sphi 0, %s37
      %s26 = sphi 0, %s33
      %s27 = sphi 0, %s25
      %s28 = sphi 0, %s26
      %s29 = sphi 0, %s27
      %s30 = sphi 0, %s28
      %s42 = sphi 0, %s44
      %s45 = sphi 0, %s42
      %s46 = sphi 0, %s45
      %s62 = sphi 0, %s46
      %s78 = sphi 0, %s80
      %s81 = sphi 0, %s78
      %s82 = sphi 0, %s81
      %s98 = sphi 0, %s82
      %s114 = sphi 0, %s116
      %s117 = sphi 0, %s114
      %s118 = sphi 0, %s117
      %s134 = sphi 0, %s118
      %s142 = sphi 0, %s144
      %s145 = sphi 0, %s142
      %s146 = sphi 0, %s145
      %s162 = sphi 0, %s146
    $region4: #{tpu_custom_call.1} parent=1 // loop_header_branch
      %21 = sbr.rel (%p19) target = $region8
    $region5: #{tpu_custom_call.1} parent=1 // loop_body
      %s23 = ssub.s32 %s18, 1
      %s24 = ssub.s32 %s18, 2
      %s31 = sadd.s32 1, %s26
      %p32 = scmp.ge.s32.totalorder %s31, 1
      %s33 = scalar_select %p32, 0, %s31
      %s34 = sadd.s32 1, %s25
      %s35 = scalar_select %p32, %s34, %s25
      %p36 = scmp.ge.s32.totalorder %s35, 2
      %s37 = scalar_select %p36, 0, %s35
      %s38 = ssub.s32 %s25, %s37
      %s39 = ssub.s32 %s26, %s33
      %s40 = sor.u32 %s38, %s39
      %p41 = scmp.eq.s32.totalorder %s40, 0
      %s43 = sadd.s32 %s42, 1
      %s44 = scalar_select %p41, %s42, %s43
      %p47 = pneg %p41
      %p48 = scmp.eq.s32.totalorder %s18, 1
      %p49 = por %p47, %p48
      %p50 = scmp.ne.s32.totalorder %s42, %s45
      %p51 = scmp.eq.s32.totalorder %s18, 0
      %p52 = por %p50, %p51
      %p53 = scmp.ne.s32.totalorder %s42, %s45
      %p54 = scmp.eq.s32.totalorder %s23, 1
      %p55 = por %p53, %p54
      %p56 = scmp.ne.s32.totalorder %s45, %s46
      %p57 = scmp.eq.s32.totalorder %s23, 0
      %p58 = por %p56, %p57
      %p59 = scmp.ne.s32.totalorder %s45, %s46
      %p60 = scmp.eq.s32.totalorder %s24, 1
      %p61 = por %p59, %p60
      %p63 = scmp.ne.s32.totalorder %s46, %s62
      %p64 = scmp.eq.s32.totalorder %s24, 0
      %p65 = por %p63, %p64
      %s66 = smul.u32 %s26, 2
      %s67 = ssub.s32 %s66, 1
      %p68 = scmp.gt.s32.totalorder %s67, 0
      %s69 = scalar_select %p68, %s67, 0
      %s70 = smul.u32 %s33, 2
      %s71 = ssub.s32 %s70, 1
      %p72 = scmp.gt.s32.totalorder %s71, 0
      %s73 = scalar_select %p72, %s71, 0
      %s74 = ssub.s32 %s25, %s37
      %s75 = ssub.s32 %s69, %s73
      %s76 = sor.u32 %s74, %s75
      %p77 = scmp.eq.s32.totalorder %s76, 0
      %s79 = sadd.s32 %s78, 1
      %s80 = scalar_select %p77, %s78, %s79
      %p83 = pneg %p77
      %p84 = scmp.eq.s32.totalorder %s18, 1
      %p85 = por %p83, %p84
      %p86 = scmp.ne.s32.totalorder %s78, %s81
      %p87 = scmp.eq.s32.totalorder %s18, 0
      %p88 = por %p86, %p87
      %p89 = scmp.ne.s32.totalorder %s78, %s81
      %p90 = scmp.eq.s32.totalorder %s23, 1
      %p91 = por %p89, %p90
      %p92 = scmp.ne.s32.totalorder %s81, %s82
      %p93 = scmp.eq.s32.totalorder %s23, 0
      %p94 = por %p92, %p93
      %p95 = scmp.ne.s32.totalorder %s81, %s82
      %p96 = scmp.eq.s32.totalorder %s24, 1
      %p97 = por %p95, %p96
      %p99 = scmp.ne.s32.totalorder %s82, %s98
      %p100 = scmp.eq.s32.totalorder %s24, 0
      %p101 = por %p99, %p100
      %s102 = sadd.s32 %s26, 1
      %s103 = smul.u32 %s102, 2
      %p104 = scmp.lt.s32.totalorder %s103, 1
      %s105 = scalar_select %p104, %s103, 1
      %s106 = sadd.s32 %s33, 1
      %s107 = smul.u32 %s106, 2
      %p108 = scmp.lt.s32.totalorder %s107, 1
      %s109 = scalar_select %p108, %s107, 1
      %s110 = ssub.s32 %s25, %s37
      %s111 = ssub.s32 %s105, %s109
      %s112 = sor.u32 %s110, %s111
      %p113 = scmp.eq.s32.totalorder %s112, 0
      %s115 = sadd.s32 %s114, 1
      %s116 = scalar_select %p113, %s114, %s115
      %p119 = pneg %p113
      %p120 = scmp.eq.s32.totalorder %s18, 1
      %p121 = por %p119, %p120
      %p122 = scmp.ne.s32.totalorder %s114, %s117
      %p123 = scmp.eq.s32.totalorder %s18, 0
      %p124 = por %p122, %p123
      %p125 = scmp.ne.s32.totalorder %s114, %s117
      %p126 = scmp.eq.s32.totalorder %s23, 1
      %p127 = por %p125, %p126
      %p128 = scmp.ne.s32.totalorder %s117, %s118
      %p129 = scmp.eq.s32.totalorder %s23, 0
      %p130 = por %p128, %p129
      %p131 = scmp.ne.s32.totalorder %s117, %s118
      %p132 = scmp.eq.s32.totalorder %s24, 1
      %p133 = por %p131, %p132
      %p135 = scmp.ne.s32.totalorder %s118, %s134
      %p136 = scmp.eq.s32.totalorder %s24, 0
      %p137 = por %p135, %p136
      %s138 = ssub.s32 %s25, %s37
      %s139 = ssub.s32 %s26, %s33
      %s140 = sor.u32 %s138, %s139
      %p141 = scmp.eq.s32.totalorder %s140, 0
      %s143 = sadd.s32 %s142, 1
      %s144 = scalar_select %p141, %s142, %s143
      %p147 = pneg %p141
      %p148 = scmp.eq.s32.totalorder %s18, 1
      %p149 = por %p147, %p148
      %p150 = scmp.ne.s32.totalorder %s142, %s145
      %p151 = scmp.eq.s32.totalorder %s18, 0
      %p152 = por %p150, %p151
      %p153 = scmp.ne.s32.totalorder %s142, %s145
      %p154 = scmp.eq.s32.totalorder %s23, 1
      %p155 = por %p153, %p154
      %p156 = scmp.ne.s32.totalorder %s145, %s146
      %p157 = scmp.eq.s32.totalorder %s23, 0
      %p158 = por %p156, %p157
      %p159 = scmp.ne.s32.totalorder %s145, %s146
      %p160 = scmp.eq.s32.totalorder %s24, 1
      %p161 = por %p159, %p160
      %p163 = scmp.ne.s32.totalorder %s146, %s162
      %p164 = scmp.eq.s32.totalorder %s24, 0
      %p165 = por %p163, %p164
      %p166 = scmp.le.s32.totalorder 1, %s18
      %p167 = scmp.lt.s32.totalorder %s18, 3
      %p168 = pnand %p166, %p167
      %p169 = pneg %p168
      // Predicated region
      $region9: #{tpu_custom_call.1} parent=5 // pred_check
        _
      $region10: #{tpu_custom_call.1} parent=5 // pred_check_branch
        %171 = sbr.rel (%p168) target = $region12
      $region11: #{tpu_custom_call.1} parent=5 // pred_region
        %s172 = ssub.s32 %s18, 1
      $region12: #{tpu_custom_call.1} parent=5 // pred_fallthru
        _
      %p173 = scmp.lt.s32.totalorder %s18, 2
      // Predicated region
      $region13: #{tpu_custom_call.1} parent=5 // pred_check
        %p174 = pneg %p173
      $region14: #{tpu_custom_call.1} parent=5 // pred_check_branch
        %176 = sbr.rel (%p174) target = $region16
      $region15: #{tpu_custom_call.1} parent=5 // pred_region
        // Predicated region
        $region17: #{tpu_custom_call.1} parent=15 // pred_check
          %p177 = pneg %p52
        $region18: #{tpu_custom_call.1} parent=15 // pred_check_branch
          %179 = sbr.rel (%p177) target = $region20
        $region19: #{tpu_custom_call.1} parent=15 // pred_region
          %s180 = sand.u32 %s42, 1
          %s181 = scalar_lea.sflag [#allocation3], %s180
          %s182 = sand.u32 %s42, 1
          %s183 = smul.addr %s182, 48
          %s184 = scalar_lea.vmem [#allocation2], %s183
          %s185 = smul.u32 2, %s26
          %s187 = ssub.s32 768, 768
          %188 = vsyncadd %s181, %s187
          %s189 = smul.addr %s25, 6
          %s190 = sadd.s32 %s185, %s189
          %s191 = smul.addr %s190, 128
          %s192 = scalar_lea.hbm %s0, %s191
          %s193 = sshll.u32 %s184, 4
          %s194 = int_to_ptr.vmem [resolvable:$true] %s193
          %199 = dma.hbm_to_vmem [thread:$0]  %s192, 768, %s194, %s181, 128, 128, 8
        $region20: #{tpu_custom_call.1} parent=15 // pred_fallthru
          _
        // Predicated region
        $region21: #{tpu_custom_call.1} parent=15 // pred_check
          %p200 = pneg %p88
        $region22: #{tpu_custom_call.1} parent=15 // pred_check_branch
          %202 = sbr.rel (%p200) target = $region24
        $region23: #{tpu_custom_call.1} parent=15 // pred_region
          %s203 = sand.u32 %s18, 1
          %s204 = scalar_lea.sflag [#allocation6], %s203
          %s205 = sand.u32 %s78, 1
          %s206 = smul.addr %s205, 24
          %s207 = scalar_lea.vmem [#allocation5], %s206
          %s208 = smul.u32 %s26, 2
          %s209 = ssub.s32 %s208, 1
          %p210 = scmp.gt.s32.totalorder %s209, 0
          %s211 = scalar_select %p210, %s209, 0
          %s213 = ssub.s32 384, 384
          %214 = vsyncadd %s204, %s213
          %s215 = smul.addr %s25, 6
          %s216 = sadd.s32 %s211, %s215
          %s217 = smul.addr %s216, 128
          %s218 = scalar_lea.hbm %s1, %s217
          %s219 = sshll.u32 %s207, 4
          %s220 = int_to_ptr.vmem [resolvable:$true] %s219
          %225 = dma.hbm_to_vmem [thread:$0]  %s218, 384, %s220, %s204, 256, 128, 8
        $region24: #{tpu_custom_call.1} parent=15 // pred_fallthru
          _
        // Predicated region
        $region25: #{tpu_custom_call.1} parent=15 // pred_check
          %p226 = pneg %p124
        $region26: #{tpu_custom_call.1} parent=15 // pred_check_branch
          %228 = sbr.rel (%p226) target = $region28
        $region27: #{tpu_custom_call.1} parent=15 // pred_region
          %s229 = sand.u32 %s18, 1
          %s230 = scalar_lea.sflag [#allocation6], %s229
          %s231 = sand.u32 %s114, 1
          %s232 = smul.addr %s231, 24
          %s233 = scalar_lea.vmem [#allocation7], %s232
          %s234 = sadd.s32 %s26, 1
          %s235 = smul.u32 %s234, 2
          %p236 = scmp.lt.s32.totalorder %s235, 1
          %s237 = scalar_select %p236, %s235, 1
          %s239 = ssub.s32 384, 384
          %240 = vsyncadd %s230, %s239
          %s241 = smul.addr %s25, 6
          %s242 = sadd.s32 %s237, %s241
          %s243 = smul.addr %s242, 128
          %s244 = scalar_lea.hbm %s2, %s243
          %s245 = sshll.u32 %s233, 4
          %s246 = int_to_ptr.vmem [resolvable:$true] %s245
          %251 = dma.hbm_to_vmem [thread:$0]  %s244, 384, %s246, %s230, 256, 128, 8
        $region28: #{tpu_custom_call.1} parent=15 // pred_fallthru
          _
      $region16: #{tpu_custom_call.1} parent=5 // pred_fallthru
        _
      %p252 = scmp.le.s32.totalorder 1, %s18
      %p253 = scmp.lt.s32.totalorder %s18, 3
      %p254 = pnand %p252, %p253
      %p255 = pneg %p254
      // Predicated region
      $region29: #{tpu_custom_call.1} parent=5 // pred_check
        _
      $region30: #{tpu_custom_call.1} parent=5 // pred_check_branch
        %257 = sbr.rel (%p254) target = $region32
      $region31: #{tpu_custom_call.1} parent=5 // pred_region
        %s258 = ssub.s32 %s18, 1
        %s259 = sand.u32 %s45, 1
        %s260 = scalar_lea.sflag [#allocation3], %s259
        %s261 = sand.u32 %s45, 1
        %s262 = smul.addr %s261, 48
        %s263 = scalar_lea.vmem [#allocation2], %s262
        // Predicated region
        $region33: #{tpu_custom_call.1} parent=31 // pred_check
          %p264 = pneg %p58
        $region34: #{tpu_custom_call.1} parent=31 // pred_check_branch
          %266 = sbr.rel (%p264) target = $region36
        $region35: #{tpu_custom_call.1} parent=31 // pred_region
          %267 = dma.done %s260, 768
        $region36: #{tpu_custom_call.1} parent=31 // pred_fallthru
          _
        %s268 = sand.u32 %s23, 1
        %s269 = scalar_lea.sflag [#allocation6], %s268
        %s270 = sand.u32 %s81, 1
        %s271 = smul.addr %s270, 24
        %s272 = scalar_lea.vmem [#allocation5], %s271
        // Predicated region
        $region37: #{tpu_custom_call.1} parent=31 // pred_check
          %p273 = pneg %p94
        $region38: #{tpu_custom_call.1} parent=31 // pred_check_branch
          %275 = sbr.rel (%p273) target = $region40
        $region39: #{tpu_custom_call.1} parent=31 // pred_region
          %276 = dma.done %s269, 384
        $region40: #{tpu_custom_call.1} parent=31 // pred_fallthru
          _
        %s277 = sand.u32 %s23, 1
        %s278 = scalar_lea.sflag [#allocation6], %s277
        %s279 = sand.u32 %s117, 1
        %s280 = smul.addr %s279, 24
        %s281 = scalar_lea.vmem [#allocation7], %s280
        // Predicated region
        $region41: #{tpu_custom_call.1} parent=31 // pred_check
          %p282 = pneg %p130
        $region42: #{tpu_custom_call.1} parent=31 // pred_check_branch
          %284 = sbr.rel (%p282) target = $region44
        $region43: #{tpu_custom_call.1} parent=31 // pred_region
          %285 = dma.done %s278, 384
        $region44: #{tpu_custom_call.1} parent=31 // pred_fallthru
          _
        %s286 = sand.u32 %s45, 1
        %s287 = scalar_lea.sflag [#allocation3], %s286
        %s288 = sand.u32 %s45, 1
        %s289 = smul.addr %s288, 48
        %s290 = scalar_lea.vmem [#allocation2], %s289
        %p291 = pneg %p58
        %p292 = pneg %p55
        %s293 = sand.u32 %s23, 1
        %s294 = scalar_lea.sflag [#allocation6], %s293
        %s295 = sand.u32 %s81, 1
        %s296 = smul.addr %s295, 24
        %s297 = scalar_lea.vmem [#allocation5], %s296
        %p298 = pneg %p94
        %p299 = pneg %p91
        %s300 = sand.u32 %s23, 1
        %s301 = scalar_lea.sflag [#allocation6], %s300
        %s302 = sand.u32 %s117, 1
        %s303 = smul.addr %s302, 24
        %s304 = scalar_lea.vmem [#allocation7], %s303
        %p305 = pneg %p130
        %p306 = pneg %p127
        %p307 = pneg %p158
        %p308 = pneg %p155
        %s309 = sand.u32 %s145, 1
        %s310 = scalar_lea.sflag [#allocation4], %s309
        %s311 = sand.u32 %s145, 1
        %s312 = smul.addr %s311, 16
        %s313 = scalar_lea.vmem [#allocation8], %s312
        %s314 = smul.u32 2, %s28
        %s315 = smul.u32 %s28, 2
        %s316 = ssub.s32 %s315, 1
        %p317 = scmp.gt.s32.totalorder %s316, 0
        %s318 = scalar_select %p317, %s316, 0
        %s319 = sadd.s32 %s28, 1
        %s320 = smul.u32 %s319, 2
        %p321 = scmp.lt.s32.totalorder %s320, 1
        %s322 = scalar_select %p321, %s320, 1
        %s323 = smul.u32 2, %s28
        %v324 = vld [vmem:[%s263] sm:$0xff]
        %v325 = vld [vmem:[%s263 + $0x8] sm:$0xff]
        %v326 = vld [vmem:[%s263 + $0x10] sm:$0xff]
        %v327 = vld [vmem:[%s263 + $0x18] sm:$0xff]
        %v328 = vld [vmem:[%s263 + $0x20] sm:$0xff]
        %v329 = vld [vmem:[%s263 + $0x28] sm:$0xff]
        %v330 = vmul.f32 %v324, 0.25678906
        %v331 = vmul.f32 %v325, 0.25678906
        %v332 = vmul.f32 %v326, 0.50412893
        %v333 = vmul.f32 %v327, 0.50412893
        %v334 = vadd.f32 %v330, %v332
        %v335 = vadd.f32 %v331, %v333
        %v336 = vmul.f32 %v328, 0.09790625
        %v337 = vmul.f32 %v329, 0.09790625
        %v338 = vadd.f32 %v334, %v336
        %v339 = vadd.f32 %v335, %v337
        %v340 = vld [vmem:[%s272 + $0x7] sm:$0x1]
        %v341 = vld [vmem:[%s272 + $0xf] sm:$0x1]
        %v342 = vld [vmem:[%s272 + $0x17] sm:$0x1]
        %v343 = vmul.f32 %v340, 0.25678906
        %v344 = vmul.f32 %v341, 0.50412893
        %v345 = vadd.f32 %v343, %v344
        %v346 = vmul.f32 %v342, 0.09790625
        %v347 = vadd.f32 %v345, %v346
        %v348 = vld [vmem:[%s281] sm:$0x1]
        %v349 = vld [vmem:[%s281 + $0x8] sm:$0x1]
        %v350 = vld [vmem:[%s281 + $0x10] sm:$0x1]
        %v351 = vmul.f32 %v348, 0.25678906
        %v352 = vmul.f32 %v349, 0.50412893
        %v353 = vadd.f32 %v351, %v352
        %v354 = vmul.f32 %v350, 0.09790625
        %v355 = vadd.f32 %v353, %v354
        %s356 = smul.u32 %s28, 16
        %vm359 = vcmask 1040384
        %v360 = vrot.slane %v338, 7
        %v361 = vrot.slane %v339, 7
        %v362 = vsel %vm359, %v360, %v361
        %v365 = vsel %vm359, %v347, %v360
        %vm366 = vcmask 1046528
        %v367 = vrot.slane %v338, 1
        %v368 = vrot.slane %v339, 1
        %v369 = vsel %vm366, %v367, %v368
        %v373 = vrot.slane %v355, 1
        %v375 = vsel %vm366, %v368, %v373
        %v376 = vlaneseq
        %v377 = vshrl.u32 %v376, 7
        %v378 = vadd.s32 %v377, 8
        %v379 = vstv %s356
        %v380 = vadd.s32 %v377, %v379
        %v381 = vadd.s32 %v378, %v379
        %vm382 = vcmp.eq.s32.totalorder %v380, 0
        %vm383 = vcmp.eq.s32.totalorder %v381, 0
        %v384 = vsel %vm382, 0.0, %v365
        %v385 = vsel %vm383, 0.0, %v362
        %vm386 = vcmp.eq.s32.totalorder %v380, 15
        %vm387 = vcmp.eq.s32.totalorder %v381, 15
        %v388 = vsel %vm386, 0.0, %v369
        %v389 = vsel %vm387, 0.0, %v375
        %v390 = vsub.f32 %v388, %v384
        %v391 = vsub.f32 %v389, %v385
        %392 = vrot.lane.b32.xlu0 %v338, 1
        %v393 = vpop.permute.xlu0 %392
        %394 = vrot.lane.b32.xlu0 %v339, 1
        %v395 = vpop.permute.xlu0 %394
        %vm398 = vcmask 7168
        %v399 = vsel %vm398, 0.0, %v393
        %v400 = vsel %vm398, 0.0, %v395
        %401 = vrot.lane.b32.xlu0 %v338, 127
        %v402 = vpop.permute.xlu0 %401
        %403 = vrot.lane.b32.xlu0 %v339, 127
        %v404 = vpop.permute.xlu0 %403
        %vm407 = vcmask 121856
        %v408 = vsel %vm407, %v402, 0.0
        %v409 = vsel %vm407, %v404, 0.0
        %v410 = vsub.f32 %v408, %v399
        %v411 = vsub.f32 %v409, %v400
        %v412 = vmul.f32 %v390, %v390
        %v413 = vmul.f32 %v391, %v391
        %v414 = vmul.f32 %v410, %v410
        %v415 = vmul.f32 %v411, %v411
        %v416 = vadd.f32 %v412, %v414
        %v417 = vadd.f32 %v413, %v415
        %v418 = vadd.f32 %v416, 1e-06
        %v419 = vadd.f32 %v417, 1e-06
        %v420 = vrsqrt.pop %v418
        %v421 = vmul.f32 %v418, %v420
        %vm422 = vcmp.eq.f32.partialorder %v418, inf
        %v423 = vsel %vm422, %v418, %v421
        %vm424 = vcmp.eq.f32.partialorder %v418, 0.0
        %v425 = vand.u32 %v418, 2147483648
        %v426 = vsel %vm424, %v425, %v423
        %v427 = vrsqrt.pop %v419
        %v428 = vmul.f32 %v419, %v427
        %vm429 = vcmp.eq.f32.partialorder %v419, inf
        %v430 = vsel %vm429, %v419, %v428
        %vm431 = vcmp.eq.f32.partialorder %v419, 0.0
        %v432 = vand.u32 %v419, 2147483648
        %v433 = vsel %vm431, %v432, %v430
        %vm434 = vcmask 130048
        %435 = vst.msk [vmem:[%s313] sm:$0xff] %vm434, %v426
        %436 = vst.msk [vmem:[%s313 + $0x8] sm:$0xff] %vm434, %v433
        %s437 = sand.u32 %s145, 1
        %s438 = scalar_lea.sflag [#allocation4], %s437
        %s439 = sand.u32 %s145, 1
        %s440 = smul.addr %s439, 16
        %s441 = scalar_lea.vmem [#allocation8], %s440
        // Predicated region
        $region45: #{tpu_custom_call.1} parent=31 // pred_check
          %p442 = pneg %p155
        $region46: #{tpu_custom_call.1} parent=31 // pred_check_branch
          %444 = sbr.rel (%p442) target = $region48
        $region47: #{tpu_custom_call.1} parent=31 // pred_region
          %s445 = smul.u32 2, %s28
          %s447 = ssub.s32 256, 256
          %448 = vsyncadd %s438, %s447
          %s449 = smul.addr %s27, 2
          %s450 = sadd.s32 %s445, %s449
          %s451 = smul.addr %s450, 128
          %s452 = scalar_lea.hbm %s3, %s451
          %s453 = sshll.u32 %s441, 4
          %s454 = int_to_ptr.vmem [resolvable:$true] %s453
          %459 = dma.vmem_to_hbm [thread:$0]  %s454, 256, %s452, %s438, 128, 128, 8
        $region48: #{tpu_custom_call.1} parent=31 // pred_fallthru
          _
      $region32: #{tpu_custom_call.1} parent=5 // pred_fallthru
        _
      %p460 = scmp.le.s32.totalorder 2, %s18
      // Predicated region
      $region49: #{tpu_custom_call.1} parent=5 // pred_check
        %p461 = pneg %p460
      $region50: #{tpu_custom_call.1} parent=5 // pred_check_branch
        %463 = sbr.rel (%p461) target = $region52
      $region51: #{tpu_custom_call.1} parent=5 // pred_region
        %s464 = ssub.s32 %s18, 2
        // Predicated region
        $region53: #{tpu_custom_call.1} parent=51 // pred_check
          %p465 = pneg %p161
        $region54: #{tpu_custom_call.1} parent=51 // pred_check_branch
          %467 = sbr.rel (%p465) target = $region56
        $region55: #{tpu_custom_call.1} parent=51 // pred_region
          %s468 = sand.u32 %s146, 1
          %s469 = scalar_lea.sflag [#allocation4], %s468
          %s470 = sand.u32 %s146, 1
          %s471 = smul.addr %s470, 16
          %s472 = scalar_lea.vmem [#allocation8], %s471
          %473 = dma.done %s469, 256
        $region56: #{tpu_custom_call.1} parent=51 // pred_fallthru
          _
      $region52: #{tpu_custom_call.1} parent=5 // pred_fallthru
        _
    $region6: #{tpu_custom_call.1} parent=1 // loop_footer
      %s22 = sadd.s32 1, %s18
    $region7: #{tpu_custom_call.1} parent=1 // loop_footer_branch
      %17 = sbr.rel target = $region3
    $region8: #{tpu_custom_call.1} parent=1 // loop_exit
      _
    %474 = vsyncpa [#allocation3], 1
    %s475 = scalar_lea.sflag [#allocation3], 1
    %476 = vsyncpa %s475, 1
    %477 = vsyncpa [#allocation6], 1
    %s478 = scalar_lea.sflag [#allocation6], 1
    %479 = vsyncpa %s478, 1
    %480 = vsyncpa [#allocation4], 1
    %s481 = scalar_lea.sflag [#allocation4], 1
    %482 = vsyncpa %s481, 1

</llo_original>
